<compile_context>
chip_gen: v5e
topology: v5e:2x2
jax: 0.10.0
libtpu: 0.0.40
codegen_flags: <defaults>
</compile_context>

<pallas_src>
import math

import numpy as np
import jax
import jax.numpy as jnp
from jax.experimental import pallas as pl
from jax.experimental.pallas import tpu as pltpu

LANE = 128
MAX_BLOCK_ROWS = 8192            # 8192 x 128 x f32 = 4 MiB per operand per buffer
MAX_FALLBACK_LANES = 64 * 1024   # lane-block cap for non-128-divisible inner extents
VMEM_LIMIT_BYTES = 32 * 1024 * 1024


# ----------------------------------------------------------------------------
# Pallas kernel: out = (param + attention) * feature, elementwise on one tile
# ----------------------------------------------------------------------------
def _attention_connection_kernel(p_ref, a_ref, f_ref, o_ref):
    # p_ref: (1,) scalar parameter in SMEM
    # a_ref / f_ref / o_ref: (1, 1, block_rows, block_lanes) tiles in VMEM
    p = p_ref[0]
    a = a_ref[...].astype(jnp.float32)
    f = f_ref[...].astype(jnp.float32)
    o_ref[...] = ((a + p) * f).astype(o_ref.dtype)


# ----------------------------------------------------------------------------
# Broadcast factorization:  out = (outer, rep, inner),  attention = (outer, inner)
# ----------------------------------------------------------------------------
def _factor_attention_broadcast(att_shape, out_shape):
    """Return (outer, rep, inner) if attention's broadcast dims are contiguous,
    else None (caller falls back to materializing the broadcast)."""
    rank = len(out_shape)
    a_shape = (1,) * (rank - len(att_shape)) + tuple(att_shape)
    bcast = [i for i in range(rank) if a_shape[i] != out_shape[i]]
    if not bcast:
        return 1, 1, int(math.prod(out_shape))
    lo, hi = min(bcast), max(bcast)
    if any(a_shape[i] != 1 for i in range(lo, hi + 1)):
        return None  # non-contiguous broadcast pattern (rare)
    outer = int(math.prod(out_shape[:lo]))
    rep = int(math.prod(out_shape[lo:hi + 1]))
    inner = int(math.prod(out_shape[hi + 1:]))
    return outer, rep, inner


# ----------------------------------------------------------------------------
# pallas_call over the 4-D (outer, rep, n_rows, lane) view
# ----------------------------------------------------------------------------
def _attention_connection_4d(param1, att4, feat4, out_dtype):
    outer, rep, n_rows, lane = feat4.shape

    if lane == LANE:
        # Lane-dense primary path: tile the row axis.
        block_rows = n_rows if n_rows <= MAX_BLOCK_ROWS else MAX_BLOCK_ROWS
        block_lanes = LANE
    else:
        # Inner extent not divisible by 128: keep rows == 1 and tile the lane
        # axis in multiples of 128 (Pallas masks the ragged tail block).
        block_rows = n_rows  # == 1
        block_lanes = lane if lane <= MAX_FALLBACK_LANES else MAX_FALLBACK_LANES

    grid = (outer,
            pl.cdiv(n_rows, block_rows),
            pl.cdiv(lane, block_lanes),
            rep)                                  # rep innermost -> attention reuse

    blk = (1, 1, block_rows, block_lanes)
    feat_spec = pl.BlockSpec(blk, lambda o, rb, lb, r: (o, r, rb, lb))
    att_spec = pl.BlockSpec(blk, lambda o, rb, lb, r: (o, 0, rb, lb))   # ignores r
    out_spec = pl.BlockSpec(blk, lambda o, rb, lb, r: (o, r, rb, lb))

    total = outer * rep * n_rows * lane
    bytes_accessed = (int(feat4.size) * feat4.dtype.itemsize
                      + int(att4.size) * att4.dtype.itemsize
                      + total * np.dtype(out_dtype).itemsize)

    return pl.pallas_call(
        _attention_connection_kernel,
        out_shape=jax.ShapeDtypeStruct((outer, rep, n_rows, lane), out_dtype),
        grid=grid,
        in_specs=[
            pl.BlockSpec(memory_space=pltpu.MemorySpace.SMEM),  # scalar param
            att_spec,
            feat_spec,
        ],
        out_specs=out_spec,
        compiler_params=pltpu.CompilerParams(
            dimension_semantics=("parallel", "parallel", "parallel", "arbitrary"),
            vmem_limit_bytes=VMEM_LIMIT_BYTES,
        ),
        cost_estimate=pl.CostEstimate(
            flops=2 * total, transcendentals=0, bytes_accessed=int(bytes_accessed)),
    )(param1, att4, feat4)


# ----------------------------------------------------------------------------
# Wrapper: PyTorch-style broadcasting semantics, zero extra HBM passes
# ----------------------------------------------------------------------------
@jax.jit
def attention_connection(feature, attention, param):
    """(param + attention) * feature with PyTorch broadcasting semantics."""
    feature = jnp.asarray(feature)
    attention = jnp.asarray(attention)
    param = jnp.asarray(param)

    out_shape = jnp.broadcast_shapes(feature.shape, attention.shape)
    # PyTorch promotes through the (float32) nn.Parameter as well.
    out_dtype = jnp.result_type(feature.dtype, attention.dtype, param.dtype)
    param1 = param.reshape(1).astype(jnp.float32)

    # feature is the "full" operand in this module; a same-shape broadcast_to
    # is a no-op, so this only materializes in the unusual reverse case.
    feat = jnp.broadcast_to(feature, out_shape)

    factors = _factor_attention_broadcast(attention.shape, out_shape)
    if factors is None:
        # Non-contiguous broadcast pattern (rare): materialize attention.
        att = jnp.broadcast_to(attention, out_shape)
        outer, rep, inner = 1, 1, int(math.prod(out_shape))
    else:
        outer, rep, inner = factors
        att = attention

    # Lane-dense factorization of the (non-broadcast) inner extent.
    if inner % LANE == 0:
        n_rows, lane = inner // LANE, LANE
    else:
        n_rows, lane = 1, inner

    feat4 = feat.reshape(outer, rep, n_rows, lane)     # free (contiguous reshape)
    att4 = att.reshape(outer, 1, n_rows, lane)         # free (contiguous reshape)

    out4 = _attention_connection_4d(param1, att4, feat4, out_dtype)
    return out4.reshape(out_shape)


# ----------------------------------------------------------------------------
# Plain-JAX reference
# ----------------------------------------------------------------------------
def attention_connection_reference(feature, attention, param):
    return (param + attention) * feature


if __name__ == "__main__":
    key = jax.random.PRNGKey(0)
    k1, k2, k3, k4, k5, k6, k7, k8 = jax.random.split(key, 8)

    # Test 1: single-channel attention map broadcast over channels (the common
    # AttentionConnection usage), default factor = 1.0.
    param1 = jnp.array([1.0], jnp.float32)
    f1 = jax.random.normal(k1, (2, 4, 8, 16, 16), jnp.float32)
    a1 = jax.random.normal(k2, (2, 1, 8, 16, 16), jnp.float32)
    o1 = jax.block_until_ready(attention_connection(f1, a1, param1))
    r1 = attention_connection_reference(f1, a1, param1)
    assert o1.shape == r1.shape and o1.dtype == r1.dtype
    assert bool(jnp.allclose(o1, r1, atol=1e-5, rtol=1e-5)), "mismatch (test 1)"

    # Test 2: same-shape operands, non-default factor.
    param2 = jnp.array([0.5], jnp.float32)
    f2 = jax.random.normal(k3, (2, 4, 8, 16, 16), jnp.float32)
    a2 = jax.random.normal(k4, (2, 4, 8, 16, 16), jnp.float32)
    o2 = jax.block_until_ready(attention_connection(f2, a2, param2))
    r2 = attention_connection_reference(f2, a2, param2)
    assert bool(jnp.allclose(o2, r2, atol=1e-5, rtol=1e-5)), "mismatch (test 2)"

    # Test 3: odd (non lane-divisible) spatial extents, broadcast attention.
    param3 = jnp.array([1.0], jnp.float32)
    f3 = jax.random.normal(k5, (2, 3, 5, 7, 9), jnp.float32)
    a3 = jax.random.normal(k6, (2, 1, 5, 7, 9), jnp.float32)
    o3 = jax.block_until_ready(attention_connection(f3, a3, param3))
    r3 = attention_connection_reference(f3, a3, param3)
    assert o3.shape == r3.shape
    assert bool(jnp.allclose(o3, r3, atol=1e-5, rtol=1e-5)), "mismatch (test 3)"

    # Test 4: mixed dtypes (bf16 attention, f32 feature) passed natively;
    # promotion happens inside the kernel; output is f32 (promotes via param).
    param4 = jnp.array([0.5], jnp.float32)
    f4 = jax.random.normal(k7, (2, 4, 8, 16, 16), jnp.float32)
    a4 = jax.random.normal(k8, (2, 1, 8, 16, 16), jnp.float32).astype(jnp.bfloat16)
    o4 = jax.block_until_ready(attention_connection(f4, a4, param4))
    r4 = attention_connection_reference(f4, a4, param4)
    assert o4.dtype == jnp.float32 and o4.shape == r4.shape
    assert bool(jnp.allclose(o4, r4, atol=1e-5, rtol=1e-5)), "mismatch (test 4)"

    print("KERNEL_OK")
</pallas_src>

<mosaic_0001>
module attributes {stable_mosaic.version = 11 : i64} {
  func.func @_attention_connection_kernel(%arg0: i32, %arg1: i32, %arg2: i32, %arg3: i32, %arg4: memref<1xf32, #tpu.memory_space<smem>>, %arg5: memref<1x1x16x128xf32, #tpu.memory_space<vmem>>, %arg6: memref<1x1x16x128xf32, #tpu.memory_space<vmem>>, %arg7: memref<1x1x16x128xf32, #tpu.memory_space<vmem>>) attributes {dimension_semantics = [#tpu.dimension_semantics<parallel>, #tpu.dimension_semantics<parallel>, #tpu.dimension_semantics<parallel>, #tpu.dimension_semantics<arbitrary>], iteration_bounds = array<i64: 2, 1, 1, 4>, scalar_prefetch = 0 : i64, scratch_operands = 0 : i64, tpu.core_type = #tpu.core_type<tc>, window_params = [{transform_indices = @transform_0, window_bounds = array<i64: 1>}, {transform_indices = @transform_1, window_bounds = array<i64: 1, 1, 16, 128>}, {transform_indices = @transform_2, window_bounds = array<i64: 1, 1, 16, 128>}, {transform_indices = @transform_3, window_bounds = array<i64: 1, 1, 16, 128>}]} {
    %c0 = arith.constant 0 : index
    %0 = memref.load %arg4[%c0] : memref<1xf32, #tpu.memory_space<smem>>
    %c0_0 = arith.constant 0 : index
    %c0_1 = arith.constant 0 : index
    %c0_2 = arith.constant 0 : index
    %c0_3 = arith.constant 0 : index
    %1 = vector.load %arg5[%c0_0, %c0_1, %c0_2, %c0_3] : memref<1x1x16x128xf32, #tpu.memory_space<vmem>>, vector<1x1x16x128xf32>
    %c0_4 = arith.constant 0 : index
    %c0_5 = arith.constant 0 : index
    %c0_6 = arith.constant 0 : index
    %c0_7 = arith.constant 0 : index
    %2 = vector.load %arg6[%c0_4, %c0_5, %c0_6, %c0_7] : memref<1x1x16x128xf32, #tpu.memory_space<vmem>>, vector<1x1x16x128xf32>
    %3 = vector.broadcast %0 : f32 to vector<1x1x16x128xf32>
    %4 = arith.addf %1, %3 : vector<1x1x16x128xf32>
    %5 = arith.mulf %4, %2 : vector<1x1x16x128xf32>
    %c0_8 = arith.constant 0 : index
    %c0_9 = arith.constant 0 : index
    %c0_10 = arith.constant 0 : index
    %c0_11 = arith.constant 0 : index
    %6 = vector.load %arg7[%c0_8, %c0_9, %c0_10, %c0_11] : memref<1x1x16x128xf32, #tpu.memory_space<vmem>>, vector<1x1x16x128xf32>
    tpu.vector_store %arg7[%c0_8, %c0_9, %c0_10, %c0_11], %5 {strides = array<i32>} : memref<1x1x16x128xf32, #tpu.memory_space<vmem>>, vector<1x1x16x128xf32>,
    return
  }
  func.func @transform_0(%arg0: i32, %arg1: i32, %arg2: i32, %arg3: i32) -> i32 {
    %c0_i32 = arith.constant 0 : i32
    %c0_i32_0 = arith.constant 0 : i32
    return %c0_i32 : i32
  }
  func.func @transform_1(%arg0: i32, %arg1: i32, %arg2: i32, %arg3: i32) -> (i32, i32, i32, i32) {
    %c0_i32 = arith.constant 0 : i32
    %c0_i32_0 = arith.constant 0 : i32
    return %arg0, %c0_i32, %arg1, %arg2 : i32, i32, i32, i32
  }
  func.func @transform_2(%arg0: i32, %arg1: i32, %arg2: i32, %arg3: i32) -> (i32, i32, i32, i32) {
    %c0_i32 = arith.constant 0 : i32
    return %arg0, %arg3, %arg1, %arg2 : i32, i32, i32, i32
  }
  func.func @transform_3(%arg0: i32, %arg1: i32, %arg2: i32, %arg3: i32) -> (i32, i32, i32, i32) {
    %c0_i32 = arith.constant 0 : i32
    return %arg0, %arg3, %arg1, %arg2 : i32, i32, i32, i32
  }
}

</mosaic_0001>

<llo_original>
// kernel: attention_connection.1
$region0: #{attention_connection.1}
  #allocation0 [shape = 'u32[]', space=smem, size = 0x4, offset = 0x4, fixed_abs, tag = 'smem constant byte address 0x4 - core index']
  #allocation1 [shape = 'u32[72,128]{1,0:T(1,128)}', space=vmem, size = 0x9000, scoped, tag = 'internal scratch']
  #allocation2 [shape = 'f32[1]{0:T(128)S(6)}', space=smem, size = 0x200, scoped, tag = 'scoped memory for attention_connection.1']
  %s0 = inlined_call_operand.<no memory space> [shape: f32[1], index: 0, kind: input, shape index: {}]
  %s1 = inlined_call_operand.vmem [shape: f32[2,1,16,128], index: 1, kind: input, shape index: {}]
  %s2 = inlined_call_operand.vmem [shape: f32[2,4,16,128], index: 2, kind: input, shape index: {}]
  %s3 = inlined_call_operand.vmem [shape: f32[2,4,16,128], index: 3, kind: output, shape index: {}]
  %s4 = sld [smem:[#allocation0]]
  $region45: #{attention_connection.1} parent=0
    _
  %s6 = ssub.s32 1, %s4
  %s7 = scalar_select 0, %s6, %s4
  %8 = sst [smem:[#allocation2]] %s0
  loop: start=0, step=1, limit=10
  $region2: #{attention_connection.1} parent=0 // loop_pre_header
    _
  $region3: #{attention_connection.1} parent=0 // loop_header
    %s10 = sphi 0, %s14
    %p11 = scmp.ge.s32.totalorder %s10, 10
    %s17 = sphi 0, %s43
    %s18 = sphi 0, %s39
    %s19 = sphi 0, %s35
    %s20 = sphi 0, %s31
    %s21 = sphi 0, %s17
    %s22 = sphi 0, %s18
    %s23 = sphi 0, %s19
    %s24 = sphi 0, %s20
    %s25 = sphi 0, %s21
    %s26 = sphi 0, %s22
    %s27 = sphi 0, %s23
    %s28 = sphi 0, %s24
    %s44 = sphi 0, %s44
    %s46 = sphi 0, %s44
    %s47 = sphi 0, %s46
    %s61 = sphi 0, %s47
    %s71 = sphi 0, %s73
    %s74 = sphi 0, %s71
    %s75 = sphi 0, %s74
    %s91 = sphi 0, %s75
    %s103 = sphi 0, %s105
    %s106 = sphi 0, %s103
    %s107 = sphi 0, %s106
    %s123 = sphi 0, %s107
    %s135 = sphi 0, %s137
    %s138 = sphi 0, %s135
    %s139 = sphi 0, %s138
    %s155 = sphi 0, %s139
  $region4: #{attention_connection.1} parent=0 // loop_header_branch
    %13 = sbr.rel (%p11) target = $region8
  $region5: #{attention_connection.1} parent=0 // loop_body
    %s15 = ssub.s32 %s10, 1
    %s16 = ssub.s32 %s10, 2
    %s29 = sadd.s32 1, %s20
    %p30 = scmp.ge.s32.totalorder %s29, 4
    %s31 = scalar_select %p30, 0, %s29
    %s32 = sadd.s32 1, %s19
    %s33 = scalar_select %p30, %s32, %s19
    %p34 = scmp.ge.s32.totalorder %s33, 1
    %s35 = scalar_select %p34, 0, %s33
    %s36 = sadd.s32 1, %s18
    %s37 = scalar_select %p34, %s36, %s18
    %p38 = scmp.ge.s32.totalorder %s37, 1
    %s39 = scalar_select %p38, 0, %s37
    %s40 = sadd.s32 1, %s17
    %s41 = scalar_select %p38, %s40, %s17
    %p42 = scmp.ge.s32.totalorder %s41, 2
    %s43 = scalar_select %p42, 0, %s41
    %s45 = sadd.s32 %s44, 1
    %p48 = scmp.eq.s32.totalorder %s10, 7
    %p49 = scmp.ne.s32.totalorder %s44, %s46
    %p50 = scmp.eq.s32.totalorder %s10, 0
    %p51 = por %p49, %p50
    %p52 = scmp.ne.s32.totalorder %s44, %s46
    %p53 = scmp.eq.s32.totalorder %s15, 7
    %p54 = por %p52, %p53
    %p55 = scmp.ne.s32.totalorder %s46, %s47
    %p56 = scmp.eq.s32.totalorder %s15, 0
    %p57 = por %p55, %p56
    %p58 = scmp.ne.s32.totalorder %s46, %s47
    %p59 = scmp.eq.s32.totalorder %s16, 7
    %p60 = por %p58, %p59
    %p62 = scmp.ne.s32.totalorder %s47, %s61
    %p63 = scmp.eq.s32.totalorder %s16, 0
    %p64 = por %p62, %p63
    %s65 = ssub.s32 %s17, %s43
    %s66 = ssub.s32 %s18, %s39
    %s67 = sor.u32 %s65, %s66
    %s68 = ssub.s32 %s19, %s35
    %s69 = sor.u32 %s67, %s68
    %p70 = scmp.eq.s32.totalorder %s69, 0
    %s72 = sadd.s32 %s71, 1
    %s73 = scalar_select %p70, %s71, %s72
    %p76 = pneg %p70
    %p77 = scmp.eq.s32.totalorder %s10, 7
    %p78 = por %p76, %p77
    %p79 = scmp.ne.s32.totalorder %s71, %s74
    %p80 = scmp.eq.s32.totalorder %s10, 0
    %p81 = por %p79, %p80
    %p82 = scmp.ne.s32.totalorder %s71, %s74
    %p83 = scmp.eq.s32.totalorder %s15, 7
    %p84 = por %p82, %p83
    %p85 = scmp.ne.s32.totalorder %s74, %s75
    %p86 = scmp.eq.s32.totalorder %s15, 0
    %p87 = por %p85, %p86
    %p88 = scmp.ne.s32.totalorder %s74, %s75
    %p89 = scmp.eq.s32.totalorder %s16, 7
    %p90 = por %p88, %p89
    %p92 = scmp.ne.s32.totalorder %s75, %s91
    %p93 = scmp.eq.s32.totalorder %s16, 0
    %p94 = por %p92, %p93
    %s95 = ssub.s32 %s17, %s43
    %s96 = ssub.s32 %s20, %s31
    %s97 = sor.u32 %s95, %s96
    %s98 = ssub.s32 %s18, %s39
    %s99 = sor.u32 %s97, %s98
    %s100 = ssub.s32 %s19, %s35
    %s101 = sor.u32 %s99, %s100
    %p102 = scmp.eq.s32.totalorder %s101, 0
    %s104 = sadd.s32 %s103, 1
    %s105 = scalar_select %p102, %s103, %s104
    %p108 = pneg %p102
    %p109 = scmp.eq.s32.totalorder %s10, 7
    %p110 = por %p108, %p109
    %p111 = scmp.ne.s32.totalorder %s103, %s106
    %p112 = scmp.eq.s32.totalorder %s10, 0
    %p113 = por %p111, %p112
    %p114 = scmp.ne.s32.totalorder %s103, %s106
    %p115 = scmp.eq.s32.totalorder %s15, 7
    %p116 = por %p114, %p115
    %p117 = scmp.ne.s32.totalorder %s106, %s107
    %p118 = scmp.eq.s32.totalorder %s15, 0
    %p119 = por %p117, %p118
    %p120 = scmp.ne.s32.totalorder %s106, %s107
    %p121 = scmp.eq.s32.totalorder %s16, 7
    %p122 = por %p120, %p121
    %p124 = scmp.ne.s32.totalorder %s107, %s123
    %p125 = scmp.eq.s32.totalorder %s16, 0
    %p126 = por %p124, %p125
    %s127 = ssub.s32 %s17, %s43
    %s128 = ssub.s32 %s20, %s31
    %s129 = sor.u32 %s127, %s128
    %s130 = ssub.s32 %s18, %s39
    %s131 = sor.u32 %s129, %s130
    %s132 = ssub.s32 %s19, %s35
    %s133 = sor.u32 %s131, %s132
    %p134 = scmp.eq.s32.totalorder %s133, 0
    %s136 = sadd.s32 %s135, 1
    %s137 = scalar_select %p134, %s135, %s136
    %p140 = pneg %p134
    %p141 = scmp.eq.s32.totalorder %s10, 7
    %p142 = por %p140, %p141
    %p143 = scmp.ne.s32.totalorder %s135, %s138
    %p144 = scmp.eq.s32.totalorder %s10, 0
    %p145 = por %p143, %p144
    %p146 = scmp.ne.s32.totalorder %s135, %s138
    %p147 = scmp.eq.s32.totalorder %s15, 7
    %p148 = por %p146, %p147
    %p149 = scmp.ne.s32.totalorder %s138, %s139
    %p150 = scmp.eq.s32.totalorder %s15, 0
    %p151 = por %p149, %p150
    %p152 = scmp.ne.s32.totalorder %s138, %s139
    %p153 = scmp.eq.s32.totalorder %s16, 7
    %p154 = por %p152, %p153
    %p156 = scmp.ne.s32.totalorder %s139, %s155
    %p157 = scmp.eq.s32.totalorder %s16, 0
    %p158 = por %p156, %p157
    %p159 = scmp.le.s32.totalorder 1, %s10
    %p160 = scmp.lt.s32.totalorder %s10, 9
    %p161 = pnand %p159, %p160
    %p162 = pneg %p161
    // Predicated region
    $region9: #{attention_connection.1} parent=5 // pred_check
      _
    $region10: #{attention_connection.1} parent=5 // pred_check_branch
      %164 = sbr.rel (%p161) target = $region12
    $region11: #{attention_connection.1} parent=5 // pred_region
      %s165 = ssub.s32 %s10, 1
      // Predicated region
      $region13: #{attention_connection.1} parent=11 // pred_check
        %p166 = pneg %p57
      $region14: #{attention_connection.1} parent=11 // pred_check_branch
        %168 = sbr.rel (%p166) target = $region16
      $region15: #{attention_connection.1} parent=11 // pred_region
        _
      $region16: #{attention_connection.1} parent=11 // pred_fallthru
        _
    $region12: #{attention_connection.1} parent=5 // pred_fallthru
      _
    %p169 = scmp.lt.s32.totalorder %s10, 8
    // Predicated region
    $region17: #{attention_connection.1} parent=5 // pred_check
      %p170 = pneg %p169
    $region18: #{attention_connection.1} parent=5 // pred_check_branch
      %172 = sbr.rel (%p170) target = $region20
    $region19: #{attention_connection.1} parent=5 // pred_region
      // Predicated region
      $region21: #{attention_connection.1} parent=19 // pred_check
        %p173 = pneg %p81
      $region22: #{attention_connection.1} parent=19 // pred_check_branch
        %175 = sbr.rel (%p173) target = $region24
      $region23: #{attention_connection.1} parent=19 // pred_region
        %s176 = smul.u32 2, %s18
        %p177 = scmp.lt.s32.totalorder %s17, 1
        %s178 = scalar_select %p177, %s17, 1
        %p179 = scmp.lt.s32.totalorder %s176, 1
        %s180 = scalar_select %p179, %s176, 1
        %p181 = scmp.lt.s32.totalorder %s19, 0
        %s182 = scalar_select %p181, %s19, 0
        %s183 = sadd.s32 %s182, %s180
        %s184 = smul.addr %s178, 2
        %s185 = sadd.s32 %s183, %s184
        %s186 = smul.addr %s185, 8
        %s187 = scalar_lea.vmem %s1, %s186
        %s188 = smul.u32 2, %s18
      $region24: #{attention_connection.1} parent=19 // pred_fallthru
        _
      // Predicated region
      $region25: #{attention_connection.1} parent=19 // pred_check
        %p189 = pneg %p113
      $region26: #{attention_connection.1} parent=19 // pred_check_branch
        %191 = sbr.rel (%p189) target = $region28
      $region27: #{attention_connection.1} parent=19 // pred_region
        %s192 = smul.u32 2, %s18
        %p193 = scmp.lt.s32.totalorder %s17, 1
        %s194 = scalar_select %p193, %s17, 1
        %p195 = scmp.lt.s32.totalorder %s20, 3
        %s196 = scalar_select %p195, %s20, 3
        %p197 = scmp.lt.s32.totalorder %s192, 1
        %s198 = scalar_select %p197, %s192, 1
        %p199 = scmp.lt.s32.totalorder %s19, 0
        %s200 = scalar_select %p199, %s19, 0
        %s201 = sadd.s32 %s200, %s198
        %s202 = smul.addr %s196, 2
        %s203 = sadd.s32 %s201, %s202
        %s204 = smul.addr %s194, 8
        %s205 = sadd.s32 %s203, %s204
        %s206 = smul.addr %s205, 8
        %s207 = scalar_lea.vmem %s2, %s206
        %s208 = smul.u32 2, %s18
      $region28: #{attention_connection.1} parent=19 // pred_fallthru
        _
    $region20: #{attention_connection.1} parent=5 // pred_fallthru
      _
    %p209 = scmp.le.s32.totalorder 1, %s10
    %p210 = scmp.lt.s32.totalorder %s10, 9
    %p211 = pnand %p209, %p210
    %p212 = pneg %p211
    // Predicated region
    $region29: #{attention_connection.1} parent=5 // pred_check
      _
    $region30: #{attention_connection.1} parent=5 // pred_check_branch
      %214 = sbr.rel (%p211) target = $region32
    $region31: #{attention_connection.1} parent=5 // pred_region
      %s215 = ssub.s32 %s10, 1
      %p216 = pneg %p57
      %p217 = pneg %p54
      %s218 = smul.u32 2, %s22
      %p219 = scmp.lt.s32.totalorder %s21, 1
      %s220 = scalar_select %p219, %s21, 1
      %p221 = scmp.lt.s32.totalorder %s218, 1
      %s222 = scalar_select %p221, %s218, 1
      %p223 = scmp.lt.s32.totalorder %s23, 0
      %s224 = scalar_select %p223, %s23, 0
      %s225 = sadd.s32 %s224, %s222
      %s226 = smul.addr %s220, 2
      %s227 = sadd.s32 %s225, %s226
      %s228 = smul.addr %s227, 8
      %s229 = scalar_lea.vmem %s1, %s228
      %p230 = pneg %p87
      %p231 = pneg %p84
      %s232 = smul.u32 2, %s22
      %p233 = scmp.lt.s32.totalorder %s21, 1
      %s234 = scalar_select %p233, %s21, 1
      %p235 = scmp.lt.s32.totalorder %s24, 3
      %s236 = scalar_select %p235, %s24, 3
      %p237 = scmp.lt.s32.totalorder %s232, 1
      %s238 = scalar_select %p237, %s232, 1
      %p239 = scmp.lt.s32.totalorder %s23, 0
      %s240 = scalar_select %p239, %s23, 0
      %s241 = sadd.s32 %s240, %s238
      %s242 = smul.addr %s236, 2
      %s243 = sadd.s32 %s241, %s242
      %s244 = smul.addr %s234, 8
      %s245 = sadd.s32 %s243, %s244
      %s246 = smul.addr %s245, 8
      %s247 = scalar_lea.vmem %s2, %s246
      %p248 = pneg %p119
      %p249 = pneg %p116
      %p250 = pneg %p151
      %p251 = pneg %p148
      %s252 = smul.u32 2, %s22
      %p253 = scmp.lt.s32.totalorder %s21, 1
      %s254 = scalar_select %p253, %s21, 1
      %p255 = scmp.lt.s32.totalorder %s24, 3
      %s256 = scalar_select %p255, %s24, 3
      %p257 = scmp.lt.s32.totalorder %s252, 1
      %s258 = scalar_select %p257, %s252, 1
      %p259 = scmp.lt.s32.totalorder %s23, 0
      %s260 = scalar_select %p259, %s23, 0
      %s261 = sadd.s32 %s260, %s258
      %s262 = smul.addr %s256, 2
      %s263 = sadd.s32 %s261, %s262
      %s264 = smul.addr %s254, 8
      %s265 = sadd.s32 %s263, %s264
      %s266 = smul.addr %s265, 8
      %s267 = scalar_lea.vmem %s3, %s266
      %s268 = smul.u32 2, %s22
      %p269 = scmp.lt.s32.totalorder %s21, 1
      %s270 = scalar_select %p269, %s21, 1
      %p271 = scmp.lt.s32.totalorder %s268, 1
      %s272 = scalar_select %p271, %s268, 1
      %p273 = scmp.lt.s32.totalorder %s23, 0
      %s274 = scalar_select %p273, %s23, 0
      %s275 = sadd.s32 %s274, %s272
      %s276 = smul.addr %s270, 2
      %s277 = sadd.s32 %s275, %s276
      %s278 = smul.addr %s277, 8
      %s279 = scalar_lea.vmem %s1, %s278
      %s280 = smul.u32 2, %s22
      %s281 = smul.u32 2, %s22
      %p282 = scmp.lt.s32.totalorder %s21, 1
      %s283 = scalar_select %p282, %s21, 1
      %p284 = scmp.lt.s32.totalorder %s24, 3
      %s285 = scalar_select %p284, %s24, 3
      %p286 = scmp.lt.s32.totalorder %s281, 1
      %s287 = scalar_select %p286, %s281, 1
      %p288 = scmp.lt.s32.totalorder %s23, 0
      %s289 = scalar_select %p288, %s23, 0
      %s290 = sadd.s32 %s289, %s287
      %s291 = smul.addr %s285, 2
      %s292 = sadd.s32 %s290, %s291
      %s293 = smul.addr %s283, 8
      %s294 = sadd.s32 %s292, %s293
      %s295 = smul.addr %s294, 8
      %s296 = scalar_lea.vmem %s2, %s295
      %s297 = smul.u32 2, %s22
      %s298 = smul.u32 2, %s22
      %p299 = scmp.lt.s32.totalorder %s21, 1
      %s300 = scalar_select %p299, %s21, 1
      %p301 = scmp.lt.s32.totalorder %s24, 3
      %s302 = scalar_select %p301, %s24, 3
      %p303 = scmp.lt.s32.totalorder %s298, 1
      %s304 = scalar_select %p303, %s298, 1
      %p305 = scmp.lt.s32.totalorder %s23, 0
      %s306 = scalar_select %p305, %s23, 0
      %s307 = sadd.s32 %s306, %s304
      %s308 = smul.addr %s302, 2
      %s309 = sadd.s32 %s307, %s308
      %s310 = smul.addr %s300, 8
      %s311 = sadd.s32 %s309, %s310
      %s312 = smul.addr %s311, 8
      %s313 = scalar_lea.vmem %s3, %s312
      %s314 = smul.u32 2, %s22
      %s315 = sld [smem:[#allocation2]]
      %v316 = vld [vmem:[%s279] sm:$0xff]
      %v317 = vld [vmem:[%s279 + $0x8] sm:$0xff]
      %v318 = vld [vmem:[%s296] sm:$0xff]
      %v319 = vld [vmem:[%s296 + $0x8] sm:$0xff]
      %v320 = vstv %s315
      %v321 = vadd.f32 %v316, %v320
      %v322 = vadd.f32 %v317, %v320
      %v323 = vmul.f32 %v321, %v318
      %v324 = vmul.f32 %v322, %v319
      %325 = vst [vmem:[%s313] sm:$0xff] %v323
      %326 = vst [vmem:[%s313 + $0x8] sm:$0xff] %v324
      %s327 = smul.u32 2, %s22
      %p328 = scmp.lt.s32.totalorder %s21, 1
      %s329 = scalar_select %p328, %s21, 1
      %p330 = scmp.lt.s32.totalorder %s24, 3
      %s331 = scalar_select %p330, %s24, 3
      %p332 = scmp.lt.s32.totalorder %s327, 1
      %s333 = scalar_select %p332, %s327, 1
      %p334 = scmp.lt.s32.totalorder %s23, 0
      %s335 = scalar_select %p334, %s23, 0
      %s336 = sadd.s32 %s335, %s333
      %s337 = smul.addr %s331, 2
      %s338 = sadd.s32 %s336, %s337
      %s339 = smul.addr %s329, 8
      %s340 = sadd.s32 %s338, %s339
      %s341 = smul.addr %s340, 8
      %s342 = scalar_lea.vmem %s3, %s341
      // Predicated region
      $region33: #{attention_connection.1} parent=31 // pred_check
        %p343 = pneg %p148
      $region34: #{attention_connection.1} parent=31 // pred_check_branch
        %345 = sbr.rel (%p343) target = $region36
      $region35: #{attention_connection.1} parent=31 // pred_region
        %s346 = smul.u32 2, %s22
      $region36: #{attention_connection.1} parent=31 // pred_fallthru
        _
    $region32: #{attention_connection.1} parent=5 // pred_fallthru
      _
    %p347 = scmp.le.s32.totalorder 2, %s10
    // Predicated region
    $region37: #{attention_connection.1} parent=5 // pred_check
      %p348 = pneg %p347
    $region38: #{attention_connection.1} parent=5 // pred_check_branch
      %350 = sbr.rel (%p348) target = $region40
    $region39: #{attention_connection.1} parent=5 // pred_region
      %s351 = ssub.s32 %s10, 2
      // Predicated region
      $region41: #{attention_connection.1} parent=39 // pred_check
        %p352 = pneg %p154
      $region42: #{attention_connection.1} parent=39 // pred_check_branch
        %354 = sbr.rel (%p352) target = $region44
      $region43: #{attention_connection.1} parent=39 // pred_region
        %s355 = smul.u32 2, %s26
        %p356 = scmp.lt.s32.totalorder %s25, 1
        %s357 = scalar_select %p356, %s25, 1
        %p358 = scmp.lt.s32.totalorder %s28, 3
        %s359 = scalar_select %p358, %s28, 3
        %p360 = scmp.lt.s32.totalorder %s355, 1
        %s361 = scalar_select %p360, %s355, 1
        %p362 = scmp.lt.s32.totalorder %s27, 0
        %s363 = scalar_select %p362, %s27, 0
        %s364 = sadd.s32 %s363, %s361
        %s365 = smul.addr %s359, 2
        %s366 = sadd.s32 %s364, %s365
        %s367 = smul.addr %s357, 8
        %s368 = sadd.s32 %s366, %s367
        %s369 = smul.addr %s368, 8
        %s370 = scalar_lea.vmem %s3, %s369
      $region44: #{attention_connection.1} parent=39 // pred_fallthru
        _
    $region40: #{attention_connection.1} parent=5 // pred_fallthru
      _
  $region6: #{attention_connection.1} parent=0 // loop_footer
    %s14 = sadd.s32 1, %s10
  $region7: #{attention_connection.1} parent=0 // loop_footer_branch
    %9 = sbr.rel target = $region3
  $region8: #{attention_connection.1} parent=0 // loop_exit
    _

</llo_original>
